<compile_context>
chip_gen: v6e
topology: v6e:2x2x1
jax: 0.10.0
libtpu: 0.0.40
codegen_flags: <defaults>
</compile_context>

<pallas_src>
import jax
import jax.numpy as jnp
from jax.experimental import pallas as pl
from jax.experimental.pallas import tpu as pltpu


def _round_up(x, m):
    return (x + m - 1) // m * m


def _cdiv(a, b):
    return (a + b - 1) // b


HEAD_PAD = 128  # merged (policy + value) head padded to 128 lanes


# ----------------------------- Pallas kernel ------------------------------- #

def _aiide_fused_kernel(obs_ref, m1_ref, b1_ref, m2_ref, b2_ref,
                        w3_ref, b3_ref, wh_ref, bh_ref, out_ref):
    """One batch tile: obs rows (TM, 100) bf16 -> padded head output (TM, 128) f32.

    All intermediates live in VMEM/vregs; four MXU matmuls back to back.
    bf16 operands, f32 accumulation, f32 biases.
    """
    x = obs_ref[...]                                               # (TM, 100) bf16
    # conv1 (1x1) as block-diagonal matmul + bias + ReLU           # (TM, 200)
    y1 = jnp.maximum(
        jnp.dot(x, m1_ref[...], preferred_element_type=jnp.float32)
        + b1_ref[...], 0.0).astype(jnp.bfloat16)
    # conv2 (2x2 valid) as matmul; output lanes already in NCHW-flatten order
    y2 = jnp.maximum(
        jnp.dot(y1, m2_ref[...], preferred_element_type=jnp.float32)
        + b2_ref[...], 0.0).astype(jnp.bfloat16)                   # (TM, 512)
    # Linear(512,128) + ReLU
    emb = jnp.maximum(
        jnp.dot(y2, w3_ref[...], preferred_element_type=jnp.float32)
        + b3_ref[...], 0.0).astype(jnp.bfloat16)                   # (TM, 128)
    # merged (and lane-padded) policy+value head: one matmul, one dense store
    out_ref[...] = (
        jnp.dot(emb, wh_ref[...], preferred_element_type=jnp.float32)
        + bh_ref[...])                                             # (TM, 128)


# ------------------------------ model wrapper ------------------------------ #

def init_params(key, num_objects, num_actions):
    """Synthetic parameters in PyTorch-equivalent (logical) layout, f32."""
    ks = jax.random.split(key, 10)
    s = 0.1
    p = {}
    # Conv2d(num_objects -> 8, k=1): stored transposed as (C, 8).
    p["w1"] = s * jax.random.normal(ks[0], (num_objects, 8), jnp.float32)
    p["b1"] = s * jax.random.normal(ks[1], (8,), jnp.float32)
    # Conv2d(8 -> 32, k=2): PyTorch layout (out=32, in=8, kh=2, kw=2).
    p["w2"] = s * jax.random.normal(ks[2], (32, 8, 2, 2), jnp.float32)
    p["b2"] = s * jax.random.normal(ks[3], (32,), jnp.float32)
    # Linear(512, 128): stored transposed as (512, 128).
    p["w3"] = s * jax.random.normal(ks[4], (512, 128), jnp.float32)
    p["b3"] = s * jax.random.normal(ks[5], (128,), jnp.float32)
    # policy_head Linear(128, A), value_head Linear(128, 1).
    p["wp"] = s * jax.random.normal(ks[6], (128, num_actions), jnp.float32)
    p["bp"] = s * jax.random.normal(ks[7], (num_actions,), jnp.float32)
    p["wv"] = s * jax.random.normal(ks[8], (128, 1), jnp.float32)
    p["bv"] = s * jax.random.normal(ks[9], (1,), jnp.float32)
    return p


def prepare_params(params, height=5, width=5):
    """One-time (outside jit) conversion to kernel layout.

    Folds both convs into dense matmul weights (bf16), bakes the NCHW flatten
    order into the conv2 output columns so w3 needs no permutation, merges
    the policy/value heads into one weight zero-padded to 128 output lanes.
    Biases stay f32.
    """
    w1, b1 = params["w1"], params["b1"]     # (C, 8), (8,)
    w2, b2 = params["w2"], params["b2"]     # (32, 8, 2, 2), (32,)
    C = w1.shape[0]
    H, W = height, width
    Ho, Wo = H - 1, W - 1

    # conv1 (1x1): block-diagonal per-pixel channel mix.
    # rows: pixel p * C + c ; cols: pixel p * 8 + j.
    eye = jnp.eye(H * W, dtype=w1.dtype)
    m1 = jnp.einsum("pq,cj->pcqj", eye, w1).reshape(H * W * C, H * W * 8)
    b1e = jnp.tile(b1, H * W).reshape(1, -1)                       # (1, 200)

    # conv2 (2x2 valid): rows (h*W + w)*8 + j ; cols k*(Ho*Wo) + qh*Wo + qw
    # (= PyTorch NCHW flatten order), so the flatten transpose vanishes.
    sel_h = (jnp.arange(H)[None, None, :] ==
             jnp.arange(Ho)[:, None, None] + jnp.arange(2)[None, :, None]
             ).astype(w2.dtype)                                    # (Ho, 2, H)
    sel_w = (jnp.arange(W)[None, None, :] ==
             jnp.arange(Wo)[:, None, None] + jnp.arange(2)[None, :, None]
             ).astype(w2.dtype)                                    # (Wo, 2, W)
    m2 = jnp.einsum("qdh,rew,kjde->hwjkqr", sel_h, sel_w, w2)
    m2 = m2.reshape(H * W * 8, 32 * Ho * Wo)                       # (200, 512)
    b2e = jnp.repeat(b2, Ho * Wo).reshape(1, -1)                   # (1, 512)

    # merged policy + value head, zero-padded to 128 lanes for dense stores.
    wh = jnp.concatenate([params["wp"], params["wv"]], axis=1)     # (128, A+1)
    bh = jnp.concatenate([params["bp"], params["bv"]])             # (A+1,)
    n_head = wh.shape[1]
    pad = HEAD_PAD - n_head
    wh = jnp.pad(wh, ((0, 0), (0, pad)))                           # (128, 128)
    bh = jnp.pad(bh, (0, pad)).reshape(1, -1)                      # (1, 128)

    # bf16 matmul operands (MXU-native); biases stay f32.
    return dict(m1=m1.astype(jnp.bfloat16), b1=b1e,
                m2=m2.astype(jnp.bfloat16), b2=b2e,
                w3=params["w3"].astype(jnp.bfloat16),
                b3=params["b3"].reshape(1, -1),
                wh=wh.astype(jnp.bfloat16), bh=bh)


def aiide_actor_apply(obs, kp, *, num_actions, tm_max=2048):
    """obs: (B, H, W, C) float32, H=W=5. Returns (logits (B, A), value (B,))."""
    B, H, W, C = obs.shape
    feat_in = H * W * C

    # Batch tiling: TM multiple of 16 (bf16 sublane pack). For large batches,
    # size TM ~ ceil(B/2) so the grid has >= 2 steps and the "parallel" batch
    # axis can shard across v7x's two TensorCores; cap at tm_max for VMEM.
    TM_ALIGN = 16
    B_aligned = _round_up(B, TM_ALIGN)
    TM = min(tm_max, max(TM_ALIGN, _round_up(_cdiv(B_aligned, 2), TM_ALIGN)))
    Bp = _round_up(B, TM)

    x = obs.reshape(B, feat_in).astype(jnp.bfloat16)   # NHWC flatten (free) + bf16
    if Bp != B:
        x = jnp.pad(x, ((0, Bp - B), (0, 0)))

    # TODO(synk): weights could use pipeline_mode=pl.Buffered(1) (single buffer,
    # they never change across grid steps); skipped here to keep lowering
    # maximally portable -- the double-buffered bf16 weights are only ~0.8 MB.
    def const(arr):
        return pl.BlockSpec(arr.shape, lambda i, _n=arr.ndim: (0,) * _n)

    flops = 2 * Bp * (feat_in * 200 + 200 * 512 + 512 * 128 + 128 * HEAD_PAD)
    weight_bytes = sum(int(v.size) * v.dtype.itemsize for v in
                       (kp["m1"], kp["b1"], kp["m2"], kp["b2"],
                        kp["w3"], kp["b3"], kp["wh"], kp["bh"]))
    bytes_accessed = Bp * feat_in * 2 + Bp * HEAD_PAD * 4 + weight_bytes

    out = pl.pallas_call(
        _aiide_fused_kernel,
        out_shape=jax.ShapeDtypeStruct((Bp, HEAD_PAD), jnp.float32),
        grid=(Bp // TM,),
        in_specs=[
            pl.BlockSpec((TM, feat_in), lambda i: (i, 0)),   # obs tile (bf16)
            const(kp["m1"]), const(kp["b1"]),                # conv1 (resident)
            const(kp["m2"]), const(kp["b2"]),                # conv2 (resident)
            const(kp["w3"]), const(kp["b3"]),                # fc    (resident)
            const(kp["wh"]), const(kp["bh"]),                # heads (resident)
        ],
        out_specs=pl.BlockSpec((TM, HEAD_PAD), lambda i: (i, 0)),
        compiler_params=pltpu.CompilerParams(
            dimension_semantics=("parallel",),               # megacore on v7x
            vmem_limit_bytes=32 * 1024 * 1024),              # safe on v5e/v6e/v7x
        cost_estimate=pl.CostEstimate(
            flops=flops, transcendentals=0, bytes_accessed=bytes_accessed),
    )(x, kp["m1"], kp["b1"], kp["m2"], kp["b2"],
      kp["w3"], kp["b3"], kp["wh"], kp["bh"])

    logits = out[:B, :num_actions]
    value = out[:B, num_actions]         # matches self._value = value.reshape(-1)
    return logits, value


aiide_actor_forward = jax.jit(aiide_actor_apply,
                              static_argnames=("num_actions", "tm_max"))


# ----------------------- plain-JAX reference (checking) -------------------- #

def reference_forward(obs, params):
    """Direct transcription of the PyTorch module (f32), for correctness checking."""
    B, H, W, C = obs.shape
    Ho, Wo = H - 1, W - 1
    y1 = jnp.maximum(
        jnp.einsum("bhwc,cj->bhwj", obs, params["w1"]) + params["b1"], 0.0)
    y2 = jnp.zeros((B, Ho, Wo, 32), jnp.float32) + params["b2"]
    for dh in (0, 1):
        for dw in (0, 1):
            y2 = y2 + jnp.einsum("bhwj,kj->bhwk",
                                 y1[:, dh:dh + Ho, dw:dw + Wo, :],
                                 params["w2"][:, :, dh, dw])
    y2 = jnp.maximum(y2, 0.0)
    flat = jnp.transpose(y2, (0, 3, 1, 2)).reshape(B, -1)   # NCHW flatten
    emb = jnp.maximum(flat @ params["w3"] + params["b3"], 0.0)
    logits = emb @ params["wp"] + params["bp"]
    value = (emb @ params["wv"] + params["bv"]).reshape(-1)
    return logits, value


# ---------------------------------- main ----------------------------------- #

if __name__ == "__main__":
    key = jax.random.PRNGKey(0)
    k_obs, k_par = jax.random.split(key)

    B, H, W, C = 2, 5, 5, 4        # num_objects = 4 (obs_space.shape[2])
    num_actions = 7                 # num_outputs

    obs = jax.random.uniform(k_obs, (B, H, W, C), dtype=jnp.float32)
    params = init_params(k_par, num_objects=C, num_actions=num_actions)
    kparams = prepare_params(params, height=H, width=W)   # one-time, outside jit

    logits, value = aiide_actor_forward(obs, kparams, num_actions=num_actions)
    logits, value = jax.block_until_ready((logits, value))

    assert logits.shape == (B, num_actions) and logits.dtype == jnp.float32
    assert value.shape == (B,) and value.dtype == jnp.float32

    # f32 reference; tolerances account for bf16 matmul operands (f32 accum).
    ref_logits, ref_value = reference_forward(obs, params)
    assert jnp.allclose(logits, ref_logits, rtol=2e-2, atol=1e-2), "logits mismatch"
    assert jnp.allclose(value, ref_value, rtol=2e-2, atol=1e-2), "value mismatch"

    print("KERNEL_OK")
</pallas_src>

<mosaic_0001>
module attributes {stable_mosaic.version = 11 : i64} {
  func.func @_aiide_fused_kernel(%arg0: i32, %arg1: memref<16x100xbf16, #tpu.memory_space<vmem>>, %arg2: memref<100x200xbf16, #tpu.memory_space<vmem>>, %arg3: memref<1x200xf32, #tpu.memory_space<vmem>>, %arg4: memref<200x512xbf16, #tpu.memory_space<vmem>>, %arg5: memref<1x512xf32, #tpu.memory_space<vmem>>, %arg6: memref<512x128xbf16, #tpu.memory_space<vmem>>, %arg7: memref<1x128xf32, #tpu.memory_space<vmem>>, %arg8: memref<128x128xbf16, #tpu.memory_space<vmem>>, %arg9: memref<1x128xf32, #tpu.memory_space<vmem>>, %arg10: memref<16x128xf32, #tpu.memory_space<vmem>>) attributes {dimension_semantics = [#tpu.dimension_semantics<parallel>], iteration_bounds = array<i64: 1>, scalar_prefetch = 0 : i64, scratch_operands = 0 : i64, tpu.core_type = #tpu.core_type<tc>, window_params = [{transform_indices = @transform_0, window_bounds = array<i64: 16, 100>}, {pipeline_mode = #tpu.pipeline_mode<synchronous>, transform_indices = @transform_1, window_bounds = array<i64: 100, 200>}, {pipeline_mode = #tpu.pipeline_mode<synchronous>, transform_indices = @transform_2, window_bounds = array<i64: 1, 200>}, {pipeline_mode = #tpu.pipeline_mode<synchronous>, transform_indices = @transform_3, window_bounds = array<i64: 200, 512>}, {pipeline_mode = #tpu.pipeline_mode<synchronous>, transform_indices = @transform_4, window_bounds = array<i64: 1, 512>}, {pipeline_mode = #tpu.pipeline_mode<synchronous>, transform_indices = @transform_5, window_bounds = array<i64: 512, 128>}, {pipeline_mode = #tpu.pipeline_mode<synchronous>, transform_indices = @transform_6, window_bounds = array<i64: 1, 128>}, {pipeline_mode = #tpu.pipeline_mode<synchronous>, transform_indices = @transform_7, window_bounds = array<i64: 128, 128>}, {pipeline_mode = #tpu.pipeline_mode<synchronous>, transform_indices = @transform_8, window_bounds = array<i64: 1, 128>}, {transform_indices = @transform_9, window_bounds = array<i64: 16, 128>}]} {
    %c0 = arith.constant 0 : index
    %c0_0 = arith.constant 0 : index
    %0 = vector.load %arg1[%c0, %c0_0] : memref<16x100xbf16, #tpu.memory_space<vmem>>, vector<16x100xbf16>
    %c0_1 = arith.constant 0 : index
    %c0_2 = arith.constant 0 : index
    %1 = vector.load %arg2[%c0_1, %c0_2] : memref<100x200xbf16, #tpu.memory_space<vmem>>, vector<100x200xbf16>
    %cst = arith.constant dense<0.000000e+00> : vector<16x200xf32>
    %2 = tpu.matmul %0, %1, %cst {dimension_numbers = #tpu.dot_dimension_numbers<[1], [0], [0], [1], [0, 0, 1, 1], [], []>} : vector<16x100xbf16>, vector<100x200xbf16>, vector<16x200xf32> -> vector<16x200xf32>
    %c0_3 = arith.constant 0 : index
    %c0_4 = arith.constant 0 : index
    %3 = vector.load %arg3[%c0_3, %c0_4] : memref<1x200xf32, #tpu.memory_space<vmem>>, vector<1x200xf32>
    %4 = vector.broadcast %3 : vector<1x200xf32> to vector<16x200xf32>
    %5 = arith.addf %2, %4 : vector<16x200xf32>
    %cst_5 = arith.constant 0.000000e+00 : f32
    %6 = vector.broadcast %cst_5 : f32 to vector<16x200xf32>
    %7 = arith.maximumf %5, %6 : vector<16x200xf32>
    %8 = arith.truncf %7 : vector<16x200xf32> to vector<16x200xbf16>
    %c0_6 = arith.constant 0 : index
    %c0_7 = arith.constant 0 : index
    %9 = vector.load %arg4[%c0_6, %c0_7] : memref<200x512xbf16, #tpu.memory_space<vmem>>, vector<200x512xbf16>
    %cst_8 = arith.constant dense<0.000000e+00> : vector<16x512xf32>
    %10 = tpu.matmul %8, %9, %cst_8 {dimension_numbers = #tpu.dot_dimension_numbers<[1], [0], [0], [1], [0, 0, 1, 1], [], []>} : vector<16x200xbf16>, vector<200x512xbf16>, vector<16x512xf32> -> vector<16x512xf32>
    %c0_9 = arith.constant 0 : index
    %c0_10 = arith.constant 0 : index
    %11 = vector.load %arg5[%c0_9, %c0_10] : memref<1x512xf32, #tpu.memory_space<vmem>>, vector<1x512xf32>
    %12 = vector.broadcast %11 : vector<1x512xf32> to vector<16x512xf32>
    %13 = arith.addf %10, %12 : vector<16x512xf32>
    %cst_11 = arith.constant 0.000000e+00 : f32
    %14 = vector.broadcast %cst_11 : f32 to vector<16x512xf32>
    %15 = arith.maximumf %13, %14 : vector<16x512xf32>
    %16 = arith.truncf %15 : vector<16x512xf32> to vector<16x512xbf16>
    %c0_12 = arith.constant 0 : index
    %c0_13 = arith.constant 0 : index
    %17 = vector.load %arg6[%c0_12, %c0_13] : memref<512x128xbf16, #tpu.memory_space<vmem>>, vector<512x128xbf16>
    %cst_14 = arith.constant dense<0.000000e+00> : vector<16x128xf32>
    %18 = tpu.matmul %16, %17, %cst_14 {dimension_numbers = #tpu.dot_dimension_numbers<[1], [0], [0], [1], [0, 0, 1, 1], [], []>} : vector<16x512xbf16>, vector<512x128xbf16>, vector<16x128xf32> -> vector<16x128xf32>
    %c0_15 = arith.constant 0 : index
    %c0_16 = arith.constant 0 : index
    %19 = vector.load %arg7[%c0_15, %c0_16] : memref<1x128xf32, #tpu.memory_space<vmem>>, vector<1x128xf32>
    %20 = vector.broadcast %19 : vector<1x128xf32> to vector<16x128xf32>
    %21 = arith.addf %18, %20 : vector<16x128xf32>
    %cst_17 = arith.constant 0.000000e+00 : f32
    %22 = vector.broadcast %cst_17 : f32 to vector<16x128xf32>
    %23 = arith.maximumf %21, %22 : vector<16x128xf32>
    %24 = arith.truncf %23 : vector<16x128xf32> to vector<16x128xbf16>
    %c0_18 = arith.constant 0 : index
    %c0_19 = arith.constant 0 : index
    %25 = vector.load %arg8[%c0_18, %c0_19] : memref<128x128xbf16, #tpu.memory_space<vmem>>, vector<128x128xbf16>
    %cst_20 = arith.constant dense<0.000000e+00> : vector<16x128xf32>
    %26 = tpu.matmul %24, %25, %cst_20 {dimension_numbers = #tpu.dot_dimension_numbers<[1], [0], [0], [1], [0, 0, 1, 1], [], []>} : vector<16x128xbf16>, vector<128x128xbf16>, vector<16x128xf32> -> vector<16x128xf32>
    %c0_21 = arith.constant 0 : index
    %c0_22 = arith.constant 0 : index
    %27 = vector.load %arg9[%c0_21, %c0_22] : memref<1x128xf32, #tpu.memory_space<vmem>>, vector<1x128xf32>
    %28 = vector.broadcast %27 : vector<1x128xf32> to vector<16x128xf32>
    %29 = arith.addf %26, %28 : vector<16x128xf32>
    %c0_23 = arith.constant 0 : index
    %c0_24 = arith.constant 0 : index
    %30 = vector.load %arg10[%c0_23, %c0_24] : memref<16x128xf32, #tpu.memory_space<vmem>>, vector<16x128xf32>
    tpu.vector_store %arg10[%c0_23, %c0_24], %29 {strides = array<i32>} : memref<16x128xf32, #tpu.memory_space<vmem>>, vector<16x128xf32>,
    return
  }
  func.func @transform_0(%arg0: i32) -> (i32, i32) {
    %c0_i32 = arith.constant 0 : i32
    %c0_i32_0 = arith.constant 0 : i32
    return %arg0, %c0_i32 : i32, i32
  }
  func.func @transform_1(%arg0: i32) -> (i32, i32) {
    %c0_i32 = arith.constant 0 : i32
    %c0_i32_0 = arith.constant 0 : i32
    %c0_i32_1 = arith.constant 0 : i32
    return %c0_i32, %c0_i32_0 : i32, i32
  }
  func.func @transform_2(%arg0: i32) -> (i32, i32) {
    %c0_i32 = arith.constant 0 : i32
    %c0_i32_0 = arith.constant 0 : i32
    %c0_i32_1 = arith.constant 0 : i32
    return %c0_i32, %c0_i32_0 : i32, i32
  }
  func.func @transform_3(%arg0: i32) -> (i32, i32) {
    %c0_i32 = arith.constant 0 : i32
    %c0_i32_0 = arith.constant 0 : i32
    %c0_i32_1 = arith.constant 0 : i32
    return %c0_i32, %c0_i32_0 : i32, i32
  }
  func.func @transform_4(%arg0: i32) -> (i32, i32) {
    %c0_i32 = arith.constant 0 : i32
    %c0_i32_0 = arith.constant 0 : i32
    %c0_i32_1 = arith.constant 0 : i32
    return %c0_i32, %c0_i32_0 : i32, i32
  }
  func.func @transform_5(%arg0: i32) -> (i32, i32) {
    %c0_i32 = arith.constant 0 : i32
    %c0_i32_0 = arith.constant 0 : i32
    %c0_i32_1 = arith.constant 0 : i32
    return %c0_i32, %c0_i32_0 : i32, i32
  }
  func.func @transform_6(%arg0: i32) -> (i32, i32) {
    %c0_i32 = arith.constant 0 : i32
    %c0_i32_0 = arith.constant 0 : i32
    %c0_i32_1 = arith.constant 0 : i32
    return %c0_i32, %c0_i32_0 : i32, i32
  }
  func.func @transform_7(%arg0: i32) -> (i32, i32) {
    %c0_i32 = arith.constant 0 : i32
    %c0_i32_0 = arith.constant 0 : i32
    %c0_i32_1 = arith.constant 0 : i32
    return %c0_i32, %c0_i32_0 : i32, i32
  }
  func.func @transform_8(%arg0: i32) -> (i32, i32) {
    %c0_i32 = arith.constant 0 : i32
    %c0_i32_0 = arith.constant 0 : i32
    %c0_i32_1 = arith.constant 0 : i32
    return %c0_i32, %c0_i32_0 : i32, i32
  }
  func.func @transform_9(%arg0: i32) -> (i32, i32) {
    %c0_i32 = arith.constant 0 : i32
    %c0_i32_0 = arith.constant 0 : i32
    return %arg0, %c0_i32 : i32, i32
  }
}

</mosaic_0001>

<llo_original>
// kernel: aiide_actor_apply.1
$region0: #{aiide_actor_apply.1}
  #allocation0 [shape = 'u32[]', space=smem, size = 0x4, offset = 0x4, fixed_abs, tag = 'smem constant byte address 0x4 - core index']
  #allocation1 [shape = 'u32[144,128]{1,0:T(1,128)}', space=vmem, size = 0x12000, scoped, tag = 'internal scratch']
  %s0 = inlined_call_operand.vmem [shape: bf16[16,100], index: 0, kind: input, shape index: {}]
  %s1 = inlined_call_operand.vmem [shape: bf16[100,200], index: 1, kind: input, shape index: {}]
  %s2 = inlined_call_operand.vmem [shape: f32[1,200], index: 2, kind: input, shape index: {}]
  %s3 = inlined_call_operand.hbm [shape: bf16[200,512], index: 3, kind: input, shape index: {}]
  %s4 = inlined_call_operand.vmem [shape: f32[1,512], index: 4, kind: input, shape index: {}]
  %s5 = inlined_call_operand.vmem [shape: bf16[512,128], index: 5, kind: input, shape index: {}]
  %s6 = inlined_call_operand.vmem [shape: f32[1,128], index: 6, kind: input, shape index: {}]
  %s7 = inlined_call_operand.vmem [shape: bf16[128,128], index: 7, kind: input, shape index: {}]
  %s8 = inlined_call_operand.vmem [shape: f32[1,128], index: 8, kind: input, shape index: {}]
  %s9 = inlined_call_operand.vmem [shape: f32[16,128], index: 9, kind: output, shape index: {}]
  %s10 = sld [smem:[#allocation0]]
  $region50: #{aiide_actor_apply.1} parent=0
    _
  %s12 = ssub.s32 1, %s10
  %s13 = scalar_select 0, %s12, %s10
  $region1: #{aiide_actor_apply.1} parent=0
    #allocation2 [shape = 'u8[204800]{0}', space=vmem, size = 0x32000, scoped, tag = 'input window, operand 3, single buffered']
    #allocation3 [shape = 's32[1]{0}', space=sflag, size = 0x4, scoped, tag = 'scoped memory for aiide_actor_apply.1']
    %14 = vsyncpa [#allocation3], 0
    // Predicated region
    $region2: #{aiide_actor_apply.1} parent=1 // pred_check
      _
    $region3: #{aiide_actor_apply.1} parent=1 // pred_check_branch
      %16 = sbr.rel (0) target = $region5
    $region4: #{aiide_actor_apply.1} parent=1 // pred_region
      _
    $region5: #{aiide_actor_apply.1} parent=1 // pred_fallthru
      _
    // Predicated region
    $region6: #{aiide_actor_apply.1} parent=1 // pred_check
      _
    $region7: #{aiide_actor_apply.1} parent=1 // pred_check_branch
      %18 = sbr.rel (0) target = $region9
    $region8: #{aiide_actor_apply.1} parent=1 // pred_region
      _
    $region9: #{aiide_actor_apply.1} parent=1 // pred_fallthru
      _
    // Predicated region
    $region10: #{aiide_actor_apply.1} parent=1 // pred_check
      _
    $region11: #{aiide_actor_apply.1} parent=1 // pred_check_branch
      %20 = sbr.rel (0) target = $region13
    $region12: #{aiide_actor_apply.1} parent=1 // pred_region
      _
    $region13: #{aiide_actor_apply.1} parent=1 // pred_fallthru
      _
    // Predicated region
    $region14: #{aiide_actor_apply.1} parent=1 // pred_check
      _
    $region15: #{aiide_actor_apply.1} parent=1 // pred_check_branch
      %22 = sbr.rel (0) target = $region17
    $region16: #{aiide_actor_apply.1} parent=1 // pred_region
      %s24 = ssub.s32 6400, 6400
      %25 = vsyncadd [#allocation3], %s24
      %s26 = sshll.u32 [#allocation2], 4
      %s27 = int_to_ptr.vmem [resolvable:$true] %s26
      %32 = dma.hbm_to_vmem [thread:$0]  %s3, 6400, %s27, [#allocation3], 256, 256, 16
    $region17: #{aiide_actor_apply.1} parent=1 // pred_fallthru
      _
    // Predicated region
    $region18: #{aiide_actor_apply.1} parent=1 // pred_check
      _
    $region19: #{aiide_actor_apply.1} parent=1 // pred_check_branch
      %34 = sbr.rel (0) target = $region21
    $region20: #{aiide_actor_apply.1} parent=1 // pred_region
      _
    $region21: #{aiide_actor_apply.1} parent=1 // pred_fallthru
      _
    // Predicated region
    $region22: #{aiide_actor_apply.1} parent=1 // pred_check
      _
    $region23: #{aiide_actor_apply.1} parent=1 // pred_check_branch
      %36 = sbr.rel (0) target = $region25
    $region24: #{aiide_actor_apply.1} parent=1 // pred_region
      _
    $region25: #{aiide_actor_apply.1} parent=1 // pred_fallthru
      _
    // Predicated region
    $region26: #{aiide_actor_apply.1} parent=1 // pred_check
      _
    $region27: #{aiide_actor_apply.1} parent=1 // pred_check_branch
      %38 = sbr.rel (0) target = $region29
    $region28: #{aiide_actor_apply.1} parent=1 // pred_region
      _
    $region29: #{aiide_actor_apply.1} parent=1 // pred_fallthru
      _
    // Predicated region
    $region30: #{aiide_actor_apply.1} parent=1 // pred_check
      _
    $region31: #{aiide_actor_apply.1} parent=1 // pred_check_branch
      %40 = sbr.rel (0) target = $region33
    $region32: #{aiide_actor_apply.1} parent=1 // pred_region
      _
    $region33: #{aiide_actor_apply.1} parent=1 // pred_fallthru
      _
    // Predicated region
    $region34: #{aiide_actor_apply.1} parent=1 // pred_check
      _
    $region35: #{aiide_actor_apply.1} parent=1 // pred_check_branch
      %42 = sbr.rel (0) target = $region37
    $region36: #{aiide_actor_apply.1} parent=1 // pred_region
      _
    $region37: #{aiide_actor_apply.1} parent=1 // pred_fallthru
      _
    // Predicated region
    $region38: #{aiide_actor_apply.1} parent=1 // pred_check
      _
    $region39: #{aiide_actor_apply.1} parent=1 // pred_check_branch
      %44 = sbr.rel (0) target = $region41
    $region40: #{aiide_actor_apply.1} parent=1 // pred_region
      %45 = dma.done [#allocation3], 6400
    $region41: #{aiide_actor_apply.1} parent=1 // pred_fallthru
      _
    %v47 = vld [vmem:[%s0] sm:$0xf]
    %v48 = vld [vmem:[%s0 + $0x4] sm:$0xf]
    %v49 = vld [vmem:[%s1] sm:$0xff]
    %v50 = vld [vmem:[%s1 + $0x8] sm:$0xff]
    %v51 = vld [vmem:[%s1 + $0x10] sm:$0xff]
    %v52 = vld [vmem:[%s1 + $0x18] sm:$0xff]
    %v53 = vld [vmem:[%s1 + $0x20] sm:$0xff]
    %v54 = vld [vmem:[%s1 + $0x28] sm:$0xff]
    %v55 = vld [vmem:[%s1 + $0x30] sm:$0xff]
    %v56 = vld [vmem:[%s1 + $0x38] sm:$0xff]
    %v57 = vld [vmem:[%s1 + $0x40] sm:$0xff]
    %v58 = vld [vmem:[%s1 + $0x48] sm:$0xff]
    %v59 = vld [vmem:[%s1 + $0x50] sm:$0xff]
    %v60 = vld [vmem:[%s1 + $0x58] sm:$0xff]
    %v61 = vld [vmem:[%s1 + $0x60] sm:$0x33]
    %v62 = vld [vmem:[%s2] sm:$0x3]
    %v64 = vlaneseq
    %v65 = vshrl.u32 %v64, 7
    %v66 = vsub.s32 0, %v65
    %v67 = vrot.slane %v62, %v66
    %v68 = vlaneseq
    %v69 = vshrl.u32 %v68, 7
    %v70 = vsub.s32 1, %v69
    %v71 = vrot.slane %v62, %v70
    %v76 = vunpack.c.l.b16 %v47
    %v77 = vunpack.c.l.b16 %v48
    %v78 = vpack.c.b16 %v77, %v76
    %v92 = vunpack.c.l.b16 %v49
    %v93 = vunpack.c.h.b16 %v49
    %v94 = vunpack.c.l.b16 %v50
    %v95 = vunpack.c.h.b16 %v50
    %v96 = vunpack.c.l.b16 %v51
    %v97 = vunpack.c.h.b16 %v51
    %v98 = vunpack.c.l.b16 %v52
    %v99 = vunpack.c.h.b16 %v52
    %v100 = vunpack.c.l.b16 %v53
    %v101 = vunpack.c.h.b16 %v53
    %v102 = vunpack.c.l.b16 %v54
    %v103 = vunpack.c.h.b16 %v54
    %v104 = vunpack.c.l.b16 %v55
    %v105 = vunpack.c.h.b16 %v55
    %v106 = vunpack.c.l.b16 %v56
    %v107 = vunpack.c.h.b16 %v56
    %v108 = vunpack.c.l.b16 %v57
    %v109 = vunpack.c.h.b16 %v57
    %v110 = vunpack.c.l.b16 %v58
    %v111 = vunpack.c.h.b16 %v58
    %v112 = vunpack.c.l.b16 %v59
    %v113 = vunpack.c.h.b16 %v59
    %v114 = vunpack.c.l.b16 %v60
    %v115 = vunpack.c.h.b16 %v60
    %v116 = vunpack.c.l.b16 %v61
    %v117 = vunpack.c.h.b16 %v61
    %v118 = vpack.c.b16 %v94, %v92
    %v119 = vpack.c.b16 %v95, %v93
    %v120 = vpack.c.b16 %v98, %v96
    %v121 = vpack.c.b16 %v99, %v97
    %v122 = vpack.c.b16 %v102, %v100
    %v123 = vpack.c.b16 %v103, %v101
    %v124 = vpack.c.b16 %v106, %v104
    %v125 = vpack.c.b16 %v107, %v105
    %v126 = vpack.c.b16 %v110, %v108
    %v127 = vpack.c.b16 %v111, %v109
    %v128 = vpack.c.b16 %v114, %v112
    %v129 = vpack.c.b16 %v115, %v113
    %v130 = vpack.c.b16 %v116, %v116
    %v131 = vpack.c.b16 %v117, %v117
    %vm144 = vcmask 818176
    %v146 = vsel %vm144, %v78, 0
    %vm148 = vcmask 1041408
    %v150 = vsel %vm148, %v130, 0
    %v153 = vsel %vm148, %v131, 0
    %155 = vmatprep.subr.bf16.mxu0 0
    %156 = vmatpush1.bf16.msra.mxu0 0
    %157 = vmatprep.subr.bf16.mxu0 %v153
    %158 = vmatpush1.bf16.msra.mxu0 %v150
    %159 = vmatprep.subr.bf16.mxu0 %v129
    %160 = vmatpush1.bf16.msra.mxu0 %v128
    %161 = vmatprep.subr.bf16.mxu0 %v127
    %162 = vmatpush1.bf16.msra.mxu0 %v126
    %163 = vmatprep.subr.bf16.mxu0 %v125
    %164 = vmatpush1.bf16.msra.mxu0 %v124
    %165 = vmatprep.subr.bf16.mxu0 %v123
    %166 = vmatpush1.bf16.msra.mxu0 %v122
    %167 = vmatprep.subr.bf16.mxu0 %v121
    %168 = vmatpush1.bf16.msra.mxu0 %v120
    %169 = vmatprep.subr.bf16.mxu0 %v119
    %170 = vmatpush1.bf16.msra.mxu0 %v118
    %171 = vmatprep.subr.bf16.mxu0 0
    %172 = vmatpush2.bf16.msra.mxu0 0
    %173 = vmatprep.subr.bf16.mxu0 0
    %174 = vmatpush2.bf16.msra.mxu0 0
    %175 = vmatprep.subr.bf16.mxu0 0
    %176 = vmatpush2.bf16.msra.mxu0 0
    %177 = vmatprep.subr.bf16.mxu0 0
    %178 = vmatpush2.bf16.msra.mxu0 0
    %179 = vmatprep.subr.bf16.mxu0 0
    %180 = vmatpush2.bf16.msra.mxu0 0
    %181 = vmatprep.subr.bf16.mxu0 0
    %182 = vmatpush2.bf16.msra.mxu0 0
    %183 = vmatprep.subr.bf16.mxu0 0
    %184 = vmatpush2.bf16.msra.mxu0 0
    %185 = vmatprep.subr.bf16.mxu0 0
    %186 = vmatpush2.bf16.msra.mxu0 0
    %187 = vmatprep.mubr.bf16.mxu0 0
    %188 = vmatmul.mubr.bf16.gmra.mxu0 %v146
    %v189 = vpop.f32.mrf.mxu0
    %v190 = vadd.f32 %v67, %v189
    %v191 = vpop.f32.mrf.mxu0
    %v192 = vadd.f32 %v71, %v191
    %v193 = vpop.f32.mrf.mxu0
    %v194 = vadd.f32 %v67, %v193
    %v195 = vpop.f32.mrf.mxu0
    %v196 = vadd.f32 %v71, %v195
    %197 = vdwg.mxu0
    %v198 = vmax.f32 %v190, 0.0
    %v199 = vmax.f32 %v192, 0.0
    %v200 = vmax.f32 %v194, 0.0
    %v201 = vmax.f32 %v196, 0.0
    %v202 = vpack.c.bf16 %v200, %v198
    %v203 = vpack.c.bf16 %v201, %v199
    %v204 = vld [vmem:[#allocation2] sm:$0xff]
    %v205 = vld [vmem:[#allocation2 + $0x8] sm:$0xff]
    %v206 = vld [vmem:[#allocation2 + $0x10] sm:$0xff]
    %v207 = vld [vmem:[#allocation2 + $0x18] sm:$0xff]
    %v208 = vld [vmem:[#allocation2 + $0x20] sm:$0xff]
    %v209 = vld [vmem:[#allocation2 + $0x28] sm:$0xff]
    %v210 = vld [vmem:[#allocation2 + $0x30] sm:$0xff]
    %v211 = vld [vmem:[#allocation2 + $0x38] sm:$0xff]
    %v212 = vld [vmem:[#allocation2 + $0x40] sm:$0xff]
    %v213 = vld [vmem:[#allocation2 + $0x48] sm:$0xff]
    %v214 = vld [vmem:[#allocation2 + $0x50] sm:$0xff]
    %v215 = vld [vmem:[#allocation2 + $0x58] sm:$0xff]
    %v216 = vld [vmem:[#allocation2 + $0x60] sm:$0xff]
    %v217 = vld [vmem:[#allocation2 + $0x68] sm:$0xff]
    %v218 = vld [vmem:[#allocation2 + $0x70] sm:$0xff]
    %v219 = vld [vmem:[#allocation2 + $0x78] sm:$0xff]
    %v220 = vld [vmem:[#allocation2 + $0x80] sm:$0xff]
    %v221 = vld [vmem:[#allocation2 + $0x88] sm:$0xff]
    %v222 = vld [vmem:[#allocation2 + $0x90] sm:$0xff]
    %v223 = vld [vmem:[#allocation2 + $0x98] sm:$0xff]
    %v224 = vld [vmem:[#allocation2 + $0xa0] sm:$0xff]
    %v225 = vld [vmem:[#allocation2 + $0xa8] sm:$0xff]
    %v226 = vld [vmem:[#allocation2 + $0xb0] sm:$0xff]
    %v227 = vld [vmem:[#allocation2 + $0xb8] sm:$0xff]
    %v228 = vld [vmem:[#allocation2 + $0xc0] sm:$0xff]
    %v229 = vld [vmem:[#allocation2 + $0xc8] sm:$0xff]
    %v230 = vld [vmem:[#allocation2 + $0xd0] sm:$0xff]
    %v231 = vld [vmem:[#allocation2 + $0xd8] sm:$0xff]
    %v232 = vld [vmem:[#allocation2 + $0xe0] sm:$0xff]
    %v233 = vld [vmem:[#allocation2 + $0xe8] sm:$0xff]
    %v234 = vld [vmem:[#allocation2 + $0xf0] sm:$0xff]
    %v235 = vld [vmem:[#allocation2 + $0xf8] sm:$0xff]
    %v236 = vld [vmem:[#allocation2 + $0x100] sm:$0xff]
    %v237 = vld [vmem:[#allocation2 + $0x108] sm:$0xff]
    %v238 = vld [vmem:[#allocation2 + $0x110] sm:$0xff]
    %v239 = vld [vmem:[#allocation2 + $0x118] sm:$0xff]
    %v240 = vld [vmem:[#allocation2 + $0x120] sm:$0xff]
    %v241 = vld [vmem:[#allocation2 + $0x128] sm:$0xff]
    %v242 = vld [vmem:[#allocation2 + $0x130] sm:$0xff]
    %v243 = vld [vmem:[#allocation2 + $0x138] sm:$0xff]
    %v244 = vld [vmem:[#allocation2 + $0x140] sm:$0xff]
    %v245 = vld [vmem:[#allocation2 + $0x148] sm:$0xff]
    %v246 = vld [vmem:[#allocation2 + $0x150] sm:$0xff]
    %v247 = vld [vmem:[#allocation2 + $0x158] sm:$0xff]
    %v248 = vld [vmem:[#allocation2 + $0x160] sm:$0xff]
    %v249 = vld [vmem:[#allocation2 + $0x168] sm:$0xff]
    %v250 = vld [vmem:[#allocation2 + $0x170] sm:$0xff]
    %v251 = vld [vmem:[#allocation2 + $0x178] sm:$0xff]
    %v252 = vld [vmem:[#allocation2 + $0x180] sm:$0xff]
    %v253 = vld [vmem:[#allocation2 + $0x188] sm:$0xff]
    %v254 = vld [vmem:[%s4] sm:$0xf]
    %v256 = vlaneseq
    %v257 = vshrl.u32 %v256, 7
    %v258 = vsub.s32 0, %v257
    %v259 = vrot.slane %v254, %v258
    %v260 = vlaneseq
    %v261 = vshrl.u32 %v260, 7
    %v262 = vsub.s32 1, %v261
    %v263 = vrot.slane %v254, %v262
    %v264 = vlaneseq
    %v265 = vshrl.u32 %v264, 7
    %v266 = vsub.s32 2, %v265
    %v267 = vrot.slane %v254, %v266
    %v268 = vlaneseq
    %v269 = vshrl.u32 %v268, 7
    %v270 = vsub.s32 3, %v269
    %v271 = vrot.slane %v254, %v270
    %v326 = vunpack.c.l.b16 %v204
    %v327 = vunpack.c.h.b16 %v204
    %v328 = vunpack.c.l.b16 %v205
    %v329 = vunpack.c.h.b16 %v205
    %v330 = vunpack.c.l.b16 %v206
    %v331 = vunpack.c.h.b16 %v206
    %v332 = vunpack.c.l.b16 %v207
    %v333 = vunpack.c.h.b16 %v207
    %v334 = vunpack.c.l.b16 %v208
    %v335 = vunpack.c.h.b16 %v208
    %v336 = vunpack.c.l.b16 %v209
    %v337 = vunpack.c.h.b16 %v209
    %v338 = vunpack.c.l.b16 %v210
    %v339 = vunpack.c.h.b16 %v210
    %v340 = vunpack.c.l.b16 %v211
    %v341 = vunpack.c.h.b16 %v211
    %v342 = vunpack.c.l.b16 %v212
    %v343 = vunpack.c.h.b16 %v212
    %v344 = vunpack.c.l.b16 %v213
    %v345 = vunpack.c.h.b16 %v213
    %v346 = vunpack.c.l.b16 %v214
    %v347 = vunpack.c.h.b16 %v214
    %v348 = vunpack.c.l.b16 %v215
    %v349 = vunpack.c.h.b16 %v215
    %v350 = vunpack.c.l.b16 %v216
    %v351 = vunpack.c.h.b16 %v216
    %v352 = vunpack.c.l.b16 %v217
    %v353 = vunpack.c.h.b16 %v217
    %v354 = vunpack.c.l.b16 %v218
    %v355 = vunpack.c.h.b16 %v218
    %v356 = vunpack.c.l.b16 %v219
    %v357 = vunpack.c.h.b16 %v219
    %v358 = vunpack.c.l.b16 %v220
    %v359 = vunpack.c.h.b16 %v220
    %v360 = vunpack.c.l.b16 %v221
    %v361 = vunpack.c.h.b16 %v221
    %v362 = vunpack.c.l.b16 %v222
    %v363 = vunpack.c.h.b16 %v222
    %v364 = vunpack.c.l.b16 %v223
    %v365 = vunpack.c.h.b16 %v223
    %v366 = vunpack.c.l.b16 %v224
    %v367 = vunpack.c.h.b16 %v224
    %v368 = vunpack.c.l.b16 %v225
    %v369 = vunpack.c.h.b16 %v225
    %v370 = vunpack.c.l.b16 %v226
    %v371 = vunpack.c.h.b16 %v226
    %v372 = vunpack.c.l.b16 %v227
    %v373 = vunpack.c.h.b16 %v227
    %v374 = vunpack.c.l.b16 %v228
    %v375 = vunpack.c.h.b16 %v228
    %v376 = vunpack.c.l.b16 %v229
    %v377 = vunpack.c.h.b16 %v229
    %v378 = vunpack.c.l.b16 %v230
    %v379 = vunpack.c.h.b16 %v230
    %v380 = vunpack.c.l.b16 %v231
    %v381 = vunpack.c.h.b16 %v231
    %v382 = vunpack.c.l.b16 %v232
    %v383 = vunpack.c.h.b16 %v232
    %v384 = vunpack.c.l.b16 %v233
    %v385 = vunpack.c.h.b16 %v233
    %v386 = vunpack.c.l.b16 %v234
    %v387 = vunpack.c.h.b16 %v234
    %v388 = vunpack.c.l.b16 %v235
    %v389 = vunpack.c.h.b16 %v235
    %v390 = vunpack.c.l.b16 %v236
    %v391 = vunpack.c.h.b16 %v236
    %v392 = vunpack.c.l.b16 %v237
    %v393 = vunpack.c.h.b16 %v237
    %v394 = vunpack.c.l.b16 %v238
    %v395 = vunpack.c.h.b16 %v238
    %v396 = vunpack.c.l.b16 %v239
    %v397 = vunpack.c.h.b16 %v239
    %v398 = vunpack.c.l.b16 %v240
    %v399 = vunpack.c.h.b16 %v240
    %v400 = vunpack.c.l.b16 %v241
    %v401 = vunpack.c.h.b16 %v241
    %v402 = vunpack.c.l.b16 %v242
    %v403 = vunpack.c.h.b16 %v242
    %v404 = vunpack.c.l.b16 %v243
    %v405 = vunpack.c.h.b16 %v243
    %v406 = vunpack.c.l.b16 %v244
    %v407 = vunpack.c.h.b16 %v244
    %v408 = vunpack.c.l.b16 %v245
    %v409 = vunpack.c.h.b16 %v245
    %v410 = vunpack.c.l.b16 %v246
    %v411 = vunpack.c.h.b16 %v246
    %v412 = vunpack.c.l.b16 %v247
    %v413 = vunpack.c.h.b16 %v247
    %v414 = vunpack.c.l.b16 %v248
    %v415 = vunpack.c.h.b16 %v248
    %v416 = vunpack.c.l.b16 %v249
    %v417 = vunpack.c.h.b16 %v249
    %v418 = vunpack.c.l.b16 %v250
    %v419 = vunpack.c.h.b16 %v250
    %v420 = vunpack.c.l.b16 %v251
    %v421 = vunpack.c.h.b16 %v251
    %v422 = vunpack.c.l.b16 %v252
    %v423 = vunpack.c.h.b16 %v252
    %v424 = vunpack.c.l.b16 %v253
    %v425 = vunpack.c.h.b16 %v253
    %v426 = vpack.c.b16 %v330, %v326
    %v427 = vpack.c.b16 %v331, %v327
    %v428 = vpack.c.b16 %v332, %v328
    %v429 = vpack.c.b16 %v333, %v329
    %v430 = vpack.c.b16 %v338, %v334
    %v431 = vpack.c.b16 %v339, %v335
    %v432 = vpack.c.b16 %v340, %v336
    %v433 = vpack.c.b16 %v341, %v337
    %v434 = vpack.c.b16 %v346, %v342
    %v435 = vpack.c.b16 %v347, %v343
    %v436 = vpack.c.b16 %v348, %v344
    %v437 = vpack.c.b16 %v349, %v345
    %v438 = vpack.c.b16 %v354, %v350
    %v439 = vpack.c.b16 %v355, %v351
    %v440 = vpack.c.b16 %v356, %v352
    %v441 = vpack.c.b16 %v357, %v353
    %v442 = vpack.c.b16 %v362, %v358
    %v443 = vpack.c.b16 %v363, %v359
    %v444 = vpack.c.b16 %v364, %v360
    %v445 = vpack.c.b16 %v365, %v361
    %v446 = vpack.c.b16 %v370, %v366
    %v447 = vpack.c.b16 %v371, %v367
    %v448 = vpack.c.b16 %v372, %v368
    %v449 = vpack.c.b16 %v373, %v369
    %v450 = vpack.c.b16 %v378, %v374
    %v451 = vpack.c.b16 %v379, %v375
    %v452 = vpack.c.b16 %v380, %v376
    %v453 = vpack.c.b16 %v381, %v377
    %v454 = vpack.c.b16 %v386, %v382
    %v455 = vpack.c.b16 %v387, %v383
    %v456 = vpack.c.b16 %v388, %v384
    %v457 = vpack.c.b16 %v389, %v385
    %v458 = vpack.c.b16 %v394, %v390
    %v459 = vpack.c.b16 %v395, %v391
    %v460 = vpack.c.b16 %v396, %v392
    %v461 = vpack.c.b16 %v397, %v393
    %v462 = vpack.c.b16 %v402, %v398
    %v463 = vpack.c.b16 %v403, %v399
    %v464 = vpack.c.b16 %v404, %v400
    %v465 = vpack.c.b16 %v405, %v401
    %v466 = vpack.c.b16 %v410, %v406
    %v467 = vpack.c.b16 %v411, %v407
    %v468 = vpack.c.b16 %v412, %v408
    %v469 = vpack.c.b16 %v413, %v409
    %v470 = vpack.c.b16 %v418, %v414
    %v471 = vpack.c.b16 %v419, %v415
    %v472 = vpack.c.b16 %v420, %v416
    %v473 = vpack.c.b16 %v421, %v417
    %v474 = vpack.c.b16 %v422, %v422
    %v475 = vpack.c.b16 %v423, %v423
    %v476 = vpack.c.b16 %v424, %v424
    %v477 = vpack.c.b16 %v425, %v425
    %vm526 = vcmask 588800
    %v528 = vsel %vm526, %v203, 0
    %vm530 = vcmask 1043456
    %v532 = vsel %vm530, %v474, 0
    %v535 = vsel %vm530, %v475, 0
    %v538 = vsel %vm530, %v476, 0
    %v541 = vsel %vm530, %v477, 0
    %543 = vmatprep.subr.bf16.mxu0 %v455
    %544 = vmatpush1.bf16.msra.mxu0 %v454
    %545 = vmatprep.subr.bf16.mxu0 %v451
    %546 = vmatpush1.bf16.msra.mxu0 %v450
    %547 = vmatprep.subr.bf16.mxu0 %v447
    %548 = vmatpush1.bf16.msra.mxu0 %v446
    %549 = vmatprep.subr.bf16.mxu0 %v443
    %550 = vmatpush1.bf16.msra.mxu0 %v442
    %551 = vmatprep.subr.bf16.mxu0 %v439
    %552 = vmatpush1.bf16.msra.mxu0 %v438
    %553 = vmatprep.subr.bf16.mxu0 %v435
    %554 = vmatpush1.bf16.msra.mxu0 %v434
    %555 = vmatprep.subr.bf16.mxu0 %v431
    %556 = vmatpush1.bf16.msra.mxu0 %v430
    %557 = vmatprep.subr.bf16.mxu0 %v427
    %558 = vmatpush1.bf16.msra.mxu0 %v426
    %559 = vmatprep.subr.bf16.mxu0 0
    %560 = vmatpush2.bf16.msra.mxu0 0
    %561 = vmatprep.subr.bf16.mxu0 0
    %562 = vmatpush2.bf16.msra.mxu0 0
    %563 = vmatprep.subr.bf16.mxu0 0
    %564 = vmatpush2.bf16.msra.mxu0 0
    %565 = vmatprep.subr.bf16.mxu0 %v535
    %566 = vmatpush2.bf16.msra.mxu0 %v532
    %567 = vmatprep.subr.bf16.mxu0 %v471
    %568 = vmatpush2.bf16.msra.mxu0 %v470
    %569 = vmatprep.subr.bf16.mxu0 %v467
    %570 = vmatpush2.bf16.msra.mxu0 %v466
    %571 = vmatprep.subr.bf16.mxu0 %v463
    %572 = vmatpush2.bf16.msra.mxu0 %v462
    %573 = vmatprep.subr.bf16.mxu0 %v459
    %574 = vmatpush2.bf16.msra.mxu0 %v458
    %575 = vmatprep.mubr.bf16.mxu0 %v528
    %576 = vmatmul.mubr.bf16.gmra.mxu0 %v202
    %v577 = vpop.f32.mrf.mxu0
    %v578 = vadd.f32 %v259, %v577
    %v579 = vpop.f32.mrf.mxu0
    %v580 = vadd.f32 %v263, %v579
    %v581 = vpop.f32.mrf.mxu0
    %v582 = vadd.f32 %v259, %v581
    %v583 = vpop.f32.mrf.mxu0
    %v584 = vadd.f32 %v263, %v583
    %585 = vdwg.mxu0
    %586 = vmatprep.subr.bf16.mxu0 %v457
    %587 = vmatpush1.bf16.msra.mxu0 %v456
    %588 = vmatprep.subr.bf16.mxu0 %v453
    %589 = vmatpush1.bf16.msra.mxu0 %v452
    %590 = vmatprep.subr.bf16.mxu0 %v449
    %591 = vmatpush1.bf16.msra.mxu0 %v448
    %592 = vmatprep.subr.bf16.mxu0 %v445
    %593 = vmatpush1.bf16.msra.mxu0 %v444
    %594 = vmatprep.subr.bf16.mxu0 %v441
    %595 = vmatpush1.bf16.msra.mxu0 %v440
    %596 = vmatprep.subr.bf16.mxu0 %v437
    %597 = vmatpush1.bf16.msra.mxu0 %v436
    %598 = vmatprep.subr.bf16.mxu0 %v433
    %599 = vmatpush1.bf16.msra.mxu0 %v432
    %600 = vmatprep.subr.bf16.mxu0 %v429
    %601 = vmatpush1.bf16.msra.mxu0 %v428
    %602 = vmatprep.subr.bf16.mxu0 0
    %603 = vmatpush2.bf16.msra.mxu0 0
    %604 = vmatprep.subr.bf16.mxu0 0
    %605 = vmatpush2.bf16.msra.mxu0 0
    %606 = vmatprep.subr.bf16.mxu0 0
    %607 = vmatpush2.bf16.msra.mxu0 0
    %608 = vmatprep.subr.bf16.mxu0 %v541
    %609 = vmatpush2.bf16.msra.mxu0 %v538
    %610 = vmatprep.subr.bf16.mxu0 %v473
    %611 = vmatpush2.bf16.msra.mxu0 %v472
    %612 = vmatprep.subr.bf16.mxu0 %v469
    %613 = vmatpush2.bf16.msra.mxu0 %v468
    %614 = vmatprep.subr.bf16.mxu0 %v465
    %615 = vmatpush2.bf16.msra.mxu0 %v464
    %616 = vmatprep.subr.bf16.mxu0 %v461
    %617 = vmatpush2.bf16.msra.mxu0 %v460
    %618 = vmatprep.mubr.bf16.mxu0 %v528
    %619 = vmatmul.mubr.bf16.gmra.mxu0 %v202
    %v620 = vpop.f32.mrf.mxu0
    %v621 = vadd.f32 %v267, %v620
    %v622 = vpop.f32.mrf.mxu0
    %v623 = vadd.f32 %v271, %v622
    %v624 = vpop.f32.mrf.mxu0
    %v625 = vadd.f32 %v267, %v624
    %v626 = vpop.f32.mrf.mxu0
    %v627 = vadd.f32 %v271, %v626
    %628 = vdwg.mxu0
    %v629 = vmax.f32 %v578, 0.0
    %v630 = vmax.f32 %v580, 0.0
    %v631 = vmax.f32 %v621, 0.0
    %v632 = vmax.f32 %v623, 0.0
    %v633 = vmax.f32 %v582, 0.0
    %v634 = vmax.f32 %v584, 0.0
    %v635 = vmax.f32 %v625, 0.0
    %v636 = vmax.f32 %v627, 0.0
    %v637 = vpack.c.bf16 %v633, %v629
    %v638 = vpack.c.bf16 %v634, %v630
    %v639 = vpack.c.bf16 %v635, %v631
    %v640 = vpack.c.bf16 %v636, %v632
    %v641 = vld [vmem:[%s5] sm:$0xf]
    %v642 = vld [vmem:[%s5 + $0x4] sm:$0xf]
    %v643 = vld [vmem:[%s5 + $0x8] sm:$0xf]
    %v644 = vld [vmem:[%s5 + $0xc] sm:$0xf]
    %v645 = vld [vmem:[%s5 + $0x10] sm:$0xf]
    %v646 = vld [vmem:[%s5 + $0x14] sm:$0xf]
    %v647 = vld [vmem:[%s5 + $0x18] sm:$0xf]
    %v648 = vld [vmem:[%s5 + $0x1c] sm:$0xf]
    %v649 = vld [vmem:[%s5 + $0x20] sm:$0xf]
    %v650 = vld [vmem:[%s5 + $0x24] sm:$0xf]
    %v651 = vld [vmem:[%s5 + $0x28] sm:$0xf]
    %v652 = vld [vmem:[%s5 + $0x2c] sm:$0xf]
    %v653 = vld [vmem:[%s5 + $0x30] sm:$0xf]
    %v654 = vld [vmem:[%s5 + $0x34] sm:$0xf]
    %v655 = vld [vmem:[%s5 + $0x38] sm:$0xf]
    %v656 = vld [vmem:[%s5 + $0x3c] sm:$0xf]
    %v657 = vld [vmem:[%s5 + $0x40] sm:$0xf]
    %v658 = vld [vmem:[%s5 + $0x44] sm:$0xf]
    %v659 = vld [vmem:[%s5 + $0x48] sm:$0xf]
    %v660 = vld [vmem:[%s5 + $0x4c] sm:$0xf]
    %v661 = vld [vmem:[%s5 + $0x50] sm:$0xf]
    %v662 = vld [vmem:[%s5 + $0x54] sm:$0xf]
    %v663 = vld [vmem:[%s5 + $0x58] sm:$0xf]
    %v664 = vld [vmem:[%s5 + $0x5c] sm:$0xf]
    %v665 = vld [vmem:[%s5 + $0x60] sm:$0xf]
    %v666 = vld [vmem:[%s5 + $0x64] sm:$0xf]
    %v667 = vld [vmem:[%s5 + $0x68] sm:$0xf]
    %v668 = vld [vmem:[%s5 + $0x6c] sm:$0xf]
    %v669 = vld [vmem:[%s5 + $0x70] sm:$0xf]
    %v670 = vld [vmem:[%s5 + $0x74] sm:$0xf]
    %v671 = vld [vmem:[%s5 + $0x78] sm:$0xf]
    %v672 = vld [vmem:[%s5 + $0x7c] sm:$0xf]
    %v673 = vld [vmem:[%s5 + $0x80] sm:$0xf]
    %v674 = vld [vmem:[%s5 + $0x84] sm:$0xf]
    %v675 = vld [vmem:[%s5 + $0x88] sm:$0xf]
    %v676 = vld [vmem:[%s5 + $0x8c] sm:$0xf]
    %v677 = vld [vmem:[%s5 + $0x90] sm:$0xf]
    %v678 = vld [vmem:[%s5 + $0x94] sm:$0xf]
    %v679 = vld [vmem:[%s5 + $0x98] sm:$0xf]
    %v680 = vld [vmem:[%s5 + $0x9c] sm:$0xf]
    %v681 = vld [vmem:[%s5 + $0xa0] sm:$0xf]
    %v682 = vld [vmem:[%s5 + $0xa4] sm:$0xf]
    %v683 = vld [vmem:[%s5 + $0xa8] sm:$0xf]
    %v684 = vld [vmem:[%s5 + $0xac] sm:$0xf]
    %v685 = vld [vmem:[%s5 + $0xb0] sm:$0xf]
    %v686 = vld [vmem:[%s5 + $0xb4] sm:$0xf]
    %v687 = vld [vmem:[%s5 + $0xb8] sm:$0xf]
    %v688 = vld [vmem:[%s5 + $0xbc] sm:$0xf]
    %v689 = vld [vmem:[%s5 + $0xc0] sm:$0xf]
    %v690 = vld [vmem:[%s5 + $0xc4] sm:$0xf]
    %v691 = vld [vmem:[%s5 + $0xc8] sm:$0xf]
    %v692 = vld [vmem:[%s5 + $0xcc] sm:$0xf]
    %v693 = vld [vmem:[%s5 + $0xd0] sm:$0xf]
    %v694 = vld [vmem:[%s5 + $0xd4] sm:$0xf]
    %v695 = vld [vmem:[%s5 + $0xd8] sm:$0xf]
    %v696 = vld [vmem:[%s5 + $0xdc] sm:$0xf]
    %v697 = vld [vmem:[%s5 + $0xe0] sm:$0xf]
    %v698 = vld [vmem:[%s5 + $0xe4] sm:$0xf]
    %v699 = vld [vmem:[%s5 + $0xe8] sm:$0xf]
    %v700 = vld [vmem:[%s5 + $0xec] sm:$0xf]
    %v701 = vld [vmem:[%s5 + $0xf0] sm:$0xf]
    %v702 = vld [vmem:[%s5 + $0xf4] sm:$0xf]
    %v703 = vld [vmem:[%s5 + $0xf8] sm:$0xf]
    %v704 = vld [vmem:[%s5 + $0xfc] sm:$0xf]
    %v705 = vld [vmem:[%s6] sm:$0x1]
    %v707 = vlaneseq
    %v708 = vshrl.u32 %v707, 7
    %v709 = vsub.s32 0, %v708
    %v710 = vrot.slane %v705, %v709
    %v776 = vunpack.c.l.b16 %v641
    %v777 = vunpack.c.l.b16 %v642
    %v778 = vunpack.c.l.b16 %v643
    %v779 = vunpack.c.l.b16 %v644
    %v780 = vunpack.c.l.b16 %v645
    %v781 = vunpack.c.l.b16 %v646
    %v782 = vunpack.c.l.b16 %v647
    %v783 = vunpack.c.l.b16 %v648
    %v784 = vunpack.c.l.b16 %v649
    %v785 = vunpack.c.l.b16 %v650
    %v786 = vunpack.c.l.b16 %v651
    %v787 = vunpack.c.l.b16 %v652
    %v788 = vunpack.c.l.b16 %v653
    %v789 = vunpack.c.l.b16 %v654
    %v790 = vunpack.c.l.b16 %v655
    %v791 = vunpack.c.l.b16 %v656
    %v792 = vunpack.c.l.b16 %v657
    %v793 = vunpack.c.l.b16 %v658
    %v794 = vunpack.c.l.b16 %v659
    %v795 = vunpack.c.l.b16 %v660
    %v796 = vunpack.c.l.b16 %v661
    %v797 = vunpack.c.l.b16 %v662
    %v798 = vunpack.c.l.b16 %v663
    %v799 = vunpack.c.l.b16 %v664
    %v800 = vunpack.c.l.b16 %v665
    %v801 = vunpack.c.l.b16 %v666
    %v802 = vunpack.c.l.b16 %v667
    %v803 = vunpack.c.l.b16 %v668
    %v804 = vunpack.c.l.b16 %v669
    %v805 = vunpack.c.l.b16 %v670
    %v806 = vunpack.c.l.b16 %v671
    %v807 = vunpack.c.l.b16 %v672
    %v808 = vunpack.c.l.b16 %v673
    %v809 = vunpack.c.l.b16 %v674
    %v810 = vunpack.c.l.b16 %v675
    %v811 = vunpack.c.l.b16 %v676
    %v812 = vunpack.c.l.b16 %v677
    %v813 = vunpack.c.l.b16 %v678
    %v814 = vunpack.c.l.b16 %v679
    %v815 = vunpack.c.l.b16 %v680
    %v816 = vunpack.c.l.b16 %v681
    %v817 = vunpack.c.l.b16 %v682
    %v818 = vunpack.c.l.b16 %v683
    %v819 = vunpack.c.l.b16 %v684
    %v820 = vunpack.c.l.b16 %v685
    %v821 = vunpack.c.l.b16 %v686
    %v822 = vunpack.c.l.b16 %v687
    %v823 = vunpack.c.l.b16 %v688
    %v824 = vunpack.c.l.b16 %v689
    %v825 = vunpack.c.l.b16 %v690
    %v826 = vunpack.c.l.b16 %v691
    %v827 = vunpack.c.l.b16 %v692
    %v828 = vunpack.c.l.b16 %v693
    %v829 = vunpack.c.l.b16 %v694
    %v830 = vunpack.c.l.b16 %v695
    %v831 = vunpack.c.l.b16 %v696
    %v832 = vunpack.c.l.b16 %v697
    %v833 = vunpack.c.l.b16 %v698
    %v834 = vunpack.c.l.b16 %v699
    %v835 = vunpack.c.l.b16 %v700
    %v836 = vunpack.c.l.b16 %v701
    %v837 = vunpack.c.l.b16 %v702
    %v838 = vunpack.c.l.b16 %v703
    %v839 = vunpack.c.l.b16 %v704
    %v840 = vpack.c.b16 %v777, %v776
    %v841 = vpack.c.b16 %v779, %v778
    %v842 = vpack.c.b16 %v781, %v780
    %v843 = vpack.c.b16 %v783, %v782
    %v844 = vpack.c.b16 %v785, %v784
    %v845 = vpack.c.b16 %v787, %v786
    %v846 = vpack.c.b16 %v789, %v788
    %v847 = vpack.c.b16 %v791, %v790
    %v848 = vpack.c.b16 %v793, %v792
    %v849 = vpack.c.b16 %v795, %v794
    %v850 = vpack.c.b16 %v797, %v796
    %v851 = vpack.c.b16 %v799, %v798
    %v852 = vpack.c.b16 %v801, %v800
    %v853 = vpack.c.b16 %v803, %v802
    %v854 = vpack.c.b16 %v805, %v804
    %v855 = vpack.c.b16 %v807, %v806
    %v856 = vpack.c.b16 %v809, %v808
    %v857 = vpack.c.b16 %v811, %v810
    %v858 = vpack.c.b16 %v813, %v812
    %v859 = vpack.c.b16 %v815, %v814
    %v860 = vpack.c.b16 %v817, %v816
    %v861 = vpack.c.b16 %v819, %v818
    %v862 = vpack.c.b16 %v821, %v820
    %v863 = vpack.c.b16 %v823, %v822
    %v864 = vpack.c.b16 %v825, %v824
    %v865 = vpack.c.b16 %v827, %v826
    %v866 = vpack.c.b16 %v829, %v828
    %v867 = vpack.c.b16 %v831, %v830
    %v868 = vpack.c.b16 %v833, %v832
    %v869 = vpack.c.b16 %v835, %v834
    %v870 = vpack.c.b16 %v837, %v836
    %v871 = vpack.c.b16 %v839, %v838
    %904 = vmatprep.subr.bf16.mxu0 0
    %905 = vmatpush1.bf16.msra.mxu0 %v847
    %906 = vmatprep.subr.bf16.mxu0 0
    %907 = vmatpush1.bf16.msra.mxu0 %v846
    %908 = vmatprep.subr.bf16.mxu0 0
    %909 = vmatpush1.bf16.msra.mxu0 %v845
    %910 = vmatprep.subr.bf16.mxu0 0
    %911 = vmatpush1.bf16.msra.mxu0 %v844
    %912 = vmatprep.subr.bf16.mxu0 0
    %913 = vmatpush1.bf16.msra.mxu0 %v843
    %914 = vmatprep.subr.bf16.mxu0 0
    %915 = vmatpush1.bf16.msra.mxu0 %v842
    %916 = vmatprep.subr.bf16.mxu0 0
    %917 = vmatpush1.bf16.msra.mxu0 %v841
    %918 = vmatprep.subr.bf16.mxu0 0
    %919 = vmatpush1.bf16.msra.mxu0 %v840
    %920 = vmatprep.subr.bf16.mxu0 0
    %921 = vmatpush2.bf16.msra.mxu0 %v855
    %922 = vmatprep.subr.bf16.mxu0 0
    %923 = vmatpush2.bf16.msra.mxu0 %v854
    %924 = vmatprep.subr.bf16.mxu0 0
    %925 = vmatpush2.bf16.msra.mxu0 %v853
    %926 = vmatprep.subr.bf16.mxu0 0
    %927 = vmatpush2.bf16.msra.mxu0 %v852
    %928 = vmatprep.subr.bf16.mxu0 0
    %929 = vmatpush2.bf16.msra.mxu0 %v851
    %930 = vmatprep.subr.bf16.mxu0 0
    %931 = vmatpush2.bf16.msra.mxu0 %v850
    %932 = vmatprep.subr.bf16.mxu0 0
    %933 = vmatpush2.bf16.msra.mxu0 %v849
    %934 = vmatprep.subr.bf16.mxu0 0
    %935 = vmatpush2.bf16.msra.mxu0 %v848
    %936 = vmatprep.mubr.bf16.mxu0 %v638
    %937 = vmatmul.mubr.bf16.gmra.mxu0 %v637
    %v938 = vpop.f32.mrf.mxu0
    %v939 = vadd.f32 %v710, %v938
    %v940 = vpop.f32.mrf.mxu0
    %v941 = vpop.f32.mrf.mxu0
    %v942 = vadd.f32 %v710, %v941
    %v943 = vpop.f32.mrf.mxu0
    %944 = vdwg.mxu0
    %945 = vmatprep.subr.bf16.mxu0 0
    %946 = vmatpush1.bf16.msra.mxu0 %v863
    %947 = vmatprep.subr.bf16.mxu0 0
    %948 = vmatpush1.bf16.msra.mxu0 %v862
    %949 = vmatprep.subr.bf16.mxu0 0
    %950 = vmatpush1.bf16.msra.mxu0 %v861
    %951 = vmatprep.subr.bf16.mxu0 0
    %952 = vmatpush1.bf16.msra.mxu0 %v860
    %953 = vmatprep.subr.bf16.mxu0 0
    %954 = vmatpush1.bf16.msra.mxu0 %v859
    %955 = vmatprep.subr.bf16.mxu0 0
    %956 = vmatpush1.bf16.msra.mxu0 %v858
    %957 = vmatprep.subr.bf16.mxu0 0
    %958 = vmatpush1.bf16.msra.mxu0 %v857
    %959 = vmatprep.subr.bf16.mxu0 0
    %960 = vmatpush1.bf16.msra.mxu0 %v856
    %961 = vmatprep.subr.bf16.mxu0 0
    %962 = vmatpush2.bf16.msra.mxu0 %v871
    %963 = vmatprep.subr.bf16.mxu0 0
    %964 = vmatpush2.bf16.msra.mxu0 %v870
    %965 = vmatprep.subr.bf16.mxu0 0
    %966 = vmatpush2.bf16.msra.mxu0 %v869
    %967 = vmatprep.subr.bf16.mxu0 0
    %968 = vmatpush2.bf16.msra.mxu0 %v868
    %969 = vmatprep.subr.bf16.mxu0 0
    %970 = vmatpush2.bf16.msra.mxu0 %v867
    %971 = vmatprep.subr.bf16.mxu0 0
    %972 = vmatpush2.bf16.msra.mxu0 %v866
    %973 = vmatprep.subr.bf16.mxu0 0
    %974 = vmatpush2.bf16.msra.mxu0 %v865
    %975 = vmatprep.subr.bf16.mxu0 0
    %976 = vmatpush2.bf16.msra.mxu0 %v864
    %977 = vmatprep.mubr.bf16.mxu0 %v640
    %978 = vmatmul.mubr.bf16.gmra.mxu0 %v639
    %v979 = vpop.f32.mrf.mxu0
    %v980 = vadd.f32 %v939, %v979
    %v981 = vpop.f32.mrf.mxu0
    %v982 = vpop.f32.mrf.mxu0
    %v983 = vadd.f32 %v942, %v982
    %v984 = vpop.f32.mrf.mxu0
    %985 = vdwg.mxu0
    %v986 = vmax.f32 %v980, 0.0
    %v987 = vmax.f32 %v983, 0.0
    %v988 = vpack.c.bf16 %v987, %v986
    %v989 = vld [vmem:[%s7] sm:$0xf]
    %v990 = vld [vmem:[%s7 + $0x4] sm:$0xf]
    %v991 = vld [vmem:[%s7 + $0x8] sm:$0xf]
    %v992 = vld [vmem:[%s7 + $0xc] sm:$0xf]
    %v993 = vld [vmem:[%s7 + $0x10] sm:$0xf]
    %v994 = vld [vmem:[%s7 + $0x14] sm:$0xf]
    %v995 = vld [vmem:[%s7 + $0x18] sm:$0xf]
    %v996 = vld [vmem:[%s7 + $0x1c] sm:$0xf]
    %v997 = vld [vmem:[%s7 + $0x20] sm:$0xf]
    %v998 = vld [vmem:[%s7 + $0x24] sm:$0xf]
    %v999 = vld [vmem:[%s7 + $0x28] sm:$0xf]
    %v1000 = vld [vmem:[%s7 + $0x2c] sm:$0xf]
    %v1001 = vld [vmem:[%s7 + $0x30] sm:$0xf]
    %v1002 = vld [vmem:[%s7 + $0x34] sm:$0xf]
    %v1003 = vld [vmem:[%s7 + $0x38] sm:$0xf]
    %v1004 = vld [vmem:[%s7 + $0x3c] sm:$0xf]
    %v1005 = vld [vmem:[%s8] sm:$0x1]
    %v1007 = vlaneseq
    %v1008 = vshrl.u32 %v1007, 7
    %v1009 = vsub.s32 0, %v1008
    %v1010 = vrot.slane %v1005, %v1009
    %v1028 = vunpack.c.l.b16 %v989
    %v1029 = vunpack.c.l.b16 %v990
    %v1030 = vunpack.c.l.b16 %v991
    %v1031 = vunpack.c.l.b16 %v992
    %v1032 = vunpack.c.l.b16 %v993
    %v1033 = vunpack.c.l.b16 %v994
    %v1034 = vunpack.c.l.b16 %v995
    %v1035 = vunpack.c.l.b16 %v996
    %v1036 = vunpack.c.l.b16 %v997
    %v1037 = vunpack.c.l.b16 %v998
    %v1038 = vunpack.c.l.b16 %v999
    %v1039 = vunpack.c.l.b16 %v1000
    %v1040 = vunpack.c.l.b16 %v1001
    %v1041 = vunpack.c.l.b16 %v1002
    %v1042 = vunpack.c.l.b16 %v1003
    %v1043 = vunpack.c.l.b16 %v1004
    %v1044 = vpack.c.b16 %v1029, %v1028
    %v1045 = vpack.c.b16 %v1031, %v1030
    %v1046 = vpack.c.b16 %v1033, %v1032
    %v1047 = vpack.c.b16 %v1035, %v1034
    %v1048 = vpack.c.b16 %v1037, %v1036
    %v1049 = vpack.c.b16 %v1039, %v1038
    %v1050 = vpack.c.b16 %v1041, %v1040
    %v1051 = vpack.c.b16 %v1043, %v1042
    %1060 = vmatprep.subr.bf16.mxu0 0
    %1061 = vmatpush1.bf16.msra.mxu0 %v1051
    %1062 = vmatprep.subr.bf16.mxu0 0
    %1063 = vmatpush1.bf16.msra.mxu0 %v1050
    %1064 = vmatprep.subr.bf16.mxu0 0
    %1065 = vmatpush1.bf16.msra.mxu0 %v1049
    %1066 = vmatprep.subr.bf16.mxu0 0
    %1067 = vmatpush1.bf16.msra.mxu0 %v1048
    %1068 = vmatprep.subr.bf16.mxu0 0
    %1069 = vmatpush1.bf16.msra.mxu0 %v1047
    %1070 = vmatprep.subr.bf16.mxu0 0
    %1071 = vmatpush1.bf16.msra.mxu0 %v1046
    %1072 = vmatprep.subr.bf16.mxu0 0
    %1073 = vmatpush1.bf16.msra.mxu0 %v1045
    %1074 = vmatprep.subr.bf16.mxu0 0
    %1075 = vmatpush1.bf16.msra.mxu0 %v1044
    %1076 = vmatprep.subr.bf16.mxu0 0
    %1077 = vmatpush2.bf16.msra.mxu0 0
    %1078 = vmatprep.subr.bf16.mxu0 0
    %1079 = vmatpush2.bf16.msra.mxu0 0
    %1080 = vmatprep.subr.bf16.mxu0 0
    %1081 = vmatpush2.bf16.msra.mxu0 0
    %1082 = vmatprep.subr.bf16.mxu0 0
    %1083 = vmatpush2.bf16.msra.mxu0 0
    %1084 = vmatprep.subr.bf16.mxu0 0
    %1085 = vmatpush2.bf16.msra.mxu0 0
    %1086 = vmatprep.subr.bf16.mxu0 0
    %1087 = vmatpush2.bf16.msra.mxu0 0
    %1088 = vmatprep.subr.bf16.mxu0 0
    %1089 = vmatpush2.bf16.msra.mxu0 0
    %1090 = vmatprep.subr.bf16.mxu0 0
    %1091 = vmatpush2.bf16.msra.mxu0 0
    %1092 = vmatprep.mubr.bf16.mxu0 0
    %1093 = vmatmul.mubr.bf16.gmra.mxu0 %v988
    %v1094 = vpop.f32.mrf.mxu0
    %v1095 = vadd.f32 %v1010, %v1094
    %v1096 = vpop.f32.mrf.mxu0
    %v1097 = vpop.f32.mrf.mxu0
    %v1098 = vadd.f32 %v1010, %v1097
    %v1099 = vpop.f32.mrf.mxu0
    %1100 = vdwg.mxu0
    %1101 = vst [vmem:[%s9] sm:$0xff] %v1095
    %1102 = vst [vmem:[%s9 + $0x8] sm:$0xff] %v1098
    // Predicated region
    $region42: #{aiide_actor_apply.1} parent=1 // pred_check
      _
    $region43: #{aiide_actor_apply.1} parent=1 // pred_check_branch
      %1104 = sbr.rel (0) target = $region45
    $region44: #{aiide_actor_apply.1} parent=1 // pred_region
      _
    $region45: #{aiide_actor_apply.1} parent=1 // pred_fallthru
      _
    // Predicated region
    $region46: #{aiide_actor_apply.1} parent=1 // pred_check
      _
    $region47: #{aiide_actor_apply.1} parent=1 // pred_check_branch
      %1106 = sbr.rel (0) target = $region49
    $region48: #{aiide_actor_apply.1} parent=1 // pred_region
      _
    $region49: #{aiide_actor_apply.1} parent=1 // pred_fallthru
      _
    %1107 = vsyncpa [#allocation3], 1

</llo_original>
